<compile_context>
chip_gen: v6e
topology: v6e:2x2x1
jax: 0.10.0
libtpu: 0.0.40
codegen_flags: <defaults>
</compile_context>

<pallas_src>
import jax
import jax.numpy as jnp
from jax.experimental import pallas as pl
from jax.experimental.pallas import tpu as pltpu


def _attentional_classify_kernel(sim_ref, y_ref, out_ref):
    # sim_ref: [b, S]   y_ref: [b, S, C]   out_ref: [C, b]   (b = batch block)
    sim = sim_ref[...].astype(jnp.float32)                 # [b, S]
    y = y_ref[...].astype(jnp.float32)                     # [b, S, C]

    # Numerically stable softmax numerator over the support (lane) axis.
    m = jnp.max(sim, axis=-1, keepdims=True)                # [b, 1]
    e = jnp.exp(sim - m)                                    # [b, S]  (EUP)
    denom = jnp.sum(e, axis=-1, keepdims=True)              # [b, 1]  (XLU lane reduce)

    # Unnormalized label-weighted sum over S (sublane reduce), normalize last:
    # reciprocals touch b elements instead of b*S divides.
    num = jnp.sum(e[:, :, None] * y, axis=1)                # [b, C]  (VPU mul + reduce)
    inv = pl.reciprocal(denom, approx=True)                 # EUP seed
    inv = inv * (2.0 - denom * inv)                         # one Newton step -> ~f32 exact
    preds = num * inv                                       # [b, C]

    # Lane-dense store: the batch block sits on the lane axis of the output.
    out_ref[...] = preds.T.astype(out_ref.dtype)


def attentional_classify(similarities, support_set_y, *, b_blk=128):
    """similarities: [B, S], support_set_y: [B, S, C] -> softmax pdf [B, C]."""
    B, S = similarities.shape
    Bz, Sz, C = support_set_y.shape
    assert (Bz, Sz) == (B, S), (support_set_y.shape, similarities.shape)

    # For B <= b_blk use a single full-extent block (all dims full extent, so
    # the (8,128) tiling rule is trivially satisfied). For larger B, tile the
    # batch with 128-row blocks: lane-dense [C, 128] output stores, a grid
    # that pipelines HBM DMAs, and >= 2 steps to shard across v7x's two TCs.
    # A partial last block is fine: rows are independent and out-of-bounds
    # rows are masked on writeback, so their garbage never reaches valid out.
    if B <= b_blk:
        b_blk = B
    grid = (pl.cdiv(B, b_blk),)

    out_t = pl.pallas_call(
        _attentional_classify_kernel,
        out_shape=jax.ShapeDtypeStruct((C, B), similarities.dtype),
        grid=grid,
        in_specs=[
            pl.BlockSpec((b_blk, S), lambda i: (i, 0)),
            pl.BlockSpec((b_blk, S, C), lambda i: (i, 0, 0)),
        ],
        out_specs=pl.BlockSpec((C, b_blk), lambda i: (0, i)),
        compiler_params=pltpu.CompilerParams(
            dimension_semantics=("parallel",),
        ),
    )(similarities, support_set_y)

    # Tiny [C, B] -> [B, C] transpose in the wrapper (cheap; keeps the kernel
    # store lane-dense).
    return out_t.T


def attentional_classify_ref(similarities, support_set_y):
    # Pure-JAX reference mirroring the PyTorch module.
    p = jax.nn.softmax(similarities.astype(jnp.float32), axis=-1)        # [B, S]
    preds = jnp.einsum("bs,bsc->bc", p, support_set_y.astype(jnp.float32))
    return preds.astype(similarities.dtype)                              # [B, C]


if __name__ == "__main__":
    key = jax.random.PRNGKey(0)
    k1, k2, k3, k4 = jax.random.split(key, 4)

    # Small few-shot sizes (single full-extent block path).
    B, S, C = 2, 8, 5
    sim = jax.random.normal(k1, (B, S), dtype=jnp.float32)
    labels = jax.random.randint(k2, (B, S), 0, C)
    # bf16 one-hot labels: exact (0/1), half the HBM bytes of the dominant tensor.
    y = jax.nn.one_hot(labels, C, dtype=jnp.bfloat16)                    # [B, S, C]

    out = jax.block_until_ready(attentional_classify(sim, y))
    ref = attentional_classify_ref(sim, y)
    assert out.shape == (B, C), out.shape
    assert jnp.allclose(out, ref, atol=1e-4, rtol=1e-4), (
        f"small case: max abs err = {jnp.max(jnp.abs(out - ref))}"
    )

    # Larger batch: exercises the tiled path (grid = 2, lane-dense [C, 128]
    # output stores, pipelined DMAs, both v7x TensorCores busy).
    B2 = 256
    sim2 = jax.random.normal(k3, (B2, S), dtype=jnp.float32)
    labels2 = jax.random.randint(k4, (B2, S), 0, C)
    y2 = jax.nn.one_hot(labels2, C, dtype=jnp.bfloat16)

    out2 = jax.block_until_ready(attentional_classify(sim2, y2))
    ref2 = attentional_classify_ref(sim2, y2)
    assert out2.shape == (B2, C), out2.shape
    assert jnp.allclose(out2, ref2, atol=1e-4, rtol=1e-4), (
        f"tiled case: max abs err = {jnp.max(jnp.abs(out2 - ref2))}"
    )

    print("KERNEL_OK")
</pallas_src>

<mosaic_0001>
module attributes {stable_mosaic.version = 11 : i64} {
  func.func @_attentional_classify_kernel(%arg0: i32, %arg1: memref<2x8xf32, #tpu.memory_space<vmem>>, %arg2: memref<2x8x5xbf16, #tpu.memory_space<vmem>>, %arg3: memref<5x2xf32, #tpu.memory_space<vmem>>) attributes {dimension_semantics = [#tpu.dimension_semantics<parallel>], iteration_bounds = array<i64: 1>, scalar_prefetch = 0 : i64, scratch_operands = 0 : i64, tpu.core_type = #tpu.core_type<tc>, window_params = [{transform_indices = @transform_0, window_bounds = array<i64: 2, 8>}, {transform_indices = @transform_1, window_bounds = array<i64: 2, 8, 5>}, {transform_indices = @transform_2, window_bounds = array<i64: 5, 2>}]} {
    %c0 = arith.constant 0 : index
    %c0_0 = arith.constant 0 : index
    %0 = vector.load %arg1[%c0, %c0_0] : memref<2x8xf32, #tpu.memory_space<vmem>>, vector<2x8xf32>
    %c0_1 = arith.constant 0 : index
    %c0_2 = arith.constant 0 : index
    %c0_3 = arith.constant 0 : index
    %1 = vector.load %arg2[%c0_1, %c0_2, %c0_3] : memref<2x8x5xbf16, #tpu.memory_space<vmem>>, vector<2x8x5xbf16>
    %2 = arith.extf %1 : vector<2x8x5xbf16> to vector<2x8x5xf32>
    %cst = arith.constant dense<0xFF800000> : vector<2xf32>
    %3 = vector.multi_reduction <maximumf>, %0, %cst [1] : vector<2x8xf32> to vector<2xf32>
    %4 = vector.shape_cast %3 : vector<2xf32> to vector<2x1xf32>
    %5 = vector.broadcast %4 : vector<2x1xf32> to vector<2x8xf32>
    %6 = arith.subf %0, %5 : vector<2x8xf32>
    %7 = math.exp %6 : vector<2x8xf32>
    %cst_4 = arith.constant dense<0.000000e+00> : vector<2xf32>
    %8 = vector.multi_reduction <add>, %7, %cst_4 [1] : vector<2x8xf32> to vector<2xf32>
    %9 = vector.shape_cast %8 : vector<2xf32> to vector<2x1xf32>
    %10 = vector.shape_cast %7 : vector<2x8xf32> to vector<2x8x1xf32>
    %11 = vector.broadcast %10 : vector<2x8x1xf32> to vector<2x8x5xf32>
    %12 = arith.mulf %11, %2 : vector<2x8x5xf32>
    %cst_5 = arith.constant dense<0.000000e+00> : vector<2x5xf32>
    %13 = vector.multi_reduction <add>, %12, %cst_5 [1] : vector<2x8x5xf32> to vector<2x5xf32>
    %14 = tpu.reciprocal %9 {approx = true} : vector<2x1xf32> -> vector<2x1xf32>
    %15 = arith.mulf %9, %14 : vector<2x1xf32>
    %cst_6 = arith.constant 2.000000e+00 : f32
    %16 = vector.broadcast %cst_6 : f32 to vector<2x1xf32>
    %17 = arith.subf %16, %15 : vector<2x1xf32>
    %18 = arith.mulf %14, %17 : vector<2x1xf32>
    %19 = vector.broadcast %18 : vector<2x1xf32> to vector<2x5xf32>
    %20 = arith.mulf %13, %19 : vector<2x5xf32>
    %21 = tpu.transpose %20, [1, 0] : vector<2x5xf32> -> vector<5x2xf32>
    %c0_7 = arith.constant 0 : index
    %c0_8 = arith.constant 0 : index
    %22 = vector.load %arg3[%c0_7, %c0_8] : memref<5x2xf32, #tpu.memory_space<vmem>>, vector<5x2xf32>
    tpu.vector_store %arg3[%c0_7, %c0_8], %21 {strides = array<i32>} : memref<5x2xf32, #tpu.memory_space<vmem>>, vector<5x2xf32>,
    return
  }
  func.func @transform_0(%arg0: i32) -> (i32, i32) {
    %c0_i32 = arith.constant 0 : i32
    %c0_i32_0 = arith.constant 0 : i32
    return %arg0, %c0_i32 : i32, i32
  }
  func.func @transform_1(%arg0: i32) -> (i32, i32, i32) {
    %c0_i32 = arith.constant 0 : i32
    %c0_i32_0 = arith.constant 0 : i32
    %c0_i32_1 = arith.constant 0 : i32
    return %arg0, %c0_i32, %c0_i32_0 : i32, i32, i32
  }
  func.func @transform_2(%arg0: i32) -> (i32, i32) {
    %c0_i32 = arith.constant 0 : i32
    %c0_i32_0 = arith.constant 0 : i32
    return %c0_i32, %arg0 : i32, i32
  }
}

</mosaic_0001>

<llo_original>
// kernel: tpu_custom_call.1
$region0: #{tpu_custom_call.1}
  #allocation0 [shape = 'u32[]', space=smem, size = 0x4, offset = 0x4, fixed_abs, tag = 'smem constant byte address 0x4 - core index']
  #allocation1 [shape = 'u32[144,128]{1,0:T(1,128)}', space=vmem, size = 0x12000, scoped, tag = 'internal scratch']
  %s0 = inlined_call_operand.vmem [shape: f32[2,8], index: 0, kind: input, shape index: {}]
  %s1 = inlined_call_operand.vmem [shape: bf16[2,8,5], index: 1, kind: input, shape index: {}]
  %s2 = inlined_call_operand.vmem [shape: f32[5,2], index: 2, kind: output, shape index: {}]
  %s3 = sld [smem:[#allocation0]]
  $region18: #{tpu_custom_call.1} parent=0
    _
  %s5 = ssub.s32 1, %s3
  %s6 = scalar_select 0, %s5, %s3
  // Predicated region
  $region2: #{tpu_custom_call.1} parent=0 // pred_check
    _
  $region3: #{tpu_custom_call.1} parent=0 // pred_check_branch
    %8 = sbr.rel (0) target = $region5
  $region4: #{tpu_custom_call.1} parent=0 // pred_region
    _
  $region5: #{tpu_custom_call.1} parent=0 // pred_fallthru
    _
  // Predicated region
  $region6: #{tpu_custom_call.1} parent=0 // pred_check
    _
  $region7: #{tpu_custom_call.1} parent=0 // pred_check_branch
    %10 = sbr.rel (0) target = $region9
  $region8: #{tpu_custom_call.1} parent=0 // pred_region
    _
  $region9: #{tpu_custom_call.1} parent=0 // pred_fallthru
    _
  %v11 = vld [vmem:[%s0] sm:$0x3]
  %v12 = vld [vmem:[%s1] sm:$0xf]
  %v13 = vld [vmem:[%s1 + $0x4] sm:$0xf]
  %v14 = vunpack.c.l.bf16 %v12
  %v15 = vunpack.c.l.bf16 %v13
  %vm16 = vcmask 58368
  %v17 = vsel %vm16, %v11, -inf
  %18 = vmax.xlane.f32.xlu0 %v17
  %v19 = vpop.xlane.xlu0 %18
  %v20 = vsub.f32 %v11, %v19
  %v21 = vmul.f32 %v20, 1.442695
  %v22 = vpow.pop %v21
  %v23 = vsel %vm16, %v22, 0.0
  %24 = vadd.xlane.f32.xlu0 %v23
  %v25 = vpop.xlane.xlu0 %24
  %v26 = vlaneseq
  %v27 = vshrl.u32 %v26, 7
  %v28 = vsub.s32 0, %v27
  %v29 = vrot.slane %v22, %v28
  %31 = vbcast.lane.b32.xlu0 %v29, 256
  %v32 = vpop.permute.xlu0 %31
  %v33 = vlaneseq
  %v34 = vshrl.u32 %v33, 7
  %v35 = vsub.s32 1, %v34
  %v36 = vrot.slane %v22, %v35
  %38 = vbcast.lane.b32.xlu0 %v36, 256
  %v39 = vpop.permute.xlu0 %38
  %v40 = vmul.f32 %v32, %v14
  %v41 = vmul.f32 %v39, %v15
  %vm42 = vcmask 39936
  %v43 = vsel %vm42, %v40, 0.0
  %v44 = vrot.slane %v43, 4
  %v45 = vadd.f32 %v43, %v44
  %v46 = vrot.slane %v45, 2
  %v47 = vadd.f32 %v45, %v46
  %v48 = vrot.slane %v47, 1
  %v49 = vadd.f32 %v47, %v48
  %v50 = vsel %vm42, %v41, 0.0
  %v51 = vrot.slane %v50, 4
  %v52 = vadd.f32 %v50, %v51
  %v53 = vrot.slane %v52, 2
  %v54 = vadd.f32 %v52, %v53
  %v55 = vrot.slane %v54, 1
  %v56 = vadd.f32 %v54, %v55
  %v57 = vrcp.pop %v25
  %v58 = vmul.f32 %v25, %v57
  %v59 = vsub.f32 2.0, %v58
  %v60 = vmul.f32 %v57, %v59
  %v62 = vrot.slane %v60, 1
  %v65 = vmul.f32 %v49, %v60
  %v66 = vmul.f32 %v56, %v62
  %v69 = vrot.slane %v66, 7
  %vm70 = vcmask 1041409
  %v71 = vsel %vm70, %v69, %v65
  %73 = vxpose.xlu0.b32.start [1/16] %v71, 128
  %74 = vxpose.xlu0.b32.cont [2/16] 0.0, 128
  %75 = vxpose.xlu0.b32.cont [3/16] 0.0, 128
  %76 = vxpose.xlu0.b32.cont [4/16] 0.0, 128
  %77 = vxpose.xlu0.b32.cont [5/16] 0.0, 128
  %78 = vxpose.xlu0.b32.cont [6/16] 0.0, 128
  %79 = vxpose.xlu0.b32.cont [7/16] 0.0, 128
  %80 = vxpose.xlu0.b32.cont [8/16] 0.0, 128
  %81 = vxpose.xlu0.b32.cont [9/16] 0.0, 128
  %82 = vxpose.xlu0.b32.cont [10/16] 0.0, 128
  %83 = vxpose.xlu0.b32.cont [11/16] 0.0, 128
  %84 = vxpose.xlu0.b32.cont [12/16] 0.0, 128
  %85 = vxpose.xlu0.b32.cont [13/16] 0.0, 128
  %86 = vxpose.xlu0.b32.cont [14/16] 0.0, 128
  %87 = vxpose.xlu0.b32.cont [15/16] 0.0, 128
  %88 = vxpose.xlu0.b32.end [16/16] 0.0, 128
  %v89 = vpop.trf.xlu0
  %v90 = vpop.trf.xlu0
  %v91 = vpop.trf.xlu0
  %v92 = vpop.trf.xlu0
  %v93 = vpop.trf.xlu0
  %v94 = vpop.trf.xlu0
  %v95 = vpop.trf.xlu0
  %v96 = vpop.trf.xlu0
  %v97 = vpop.trf.xlu0
  %v98 = vpop.trf.xlu0
  %v99 = vpop.trf.xlu0
  %v100 = vpop.trf.xlu0
  %v101 = vpop.trf.xlu0
  %v102 = vpop.trf.xlu0
  %v103 = vpop.trf.xlu0
  %v104 = vpop.trf.xlu0
  %vm105 = vcmask 12288
  %106 = vst.msk [vmem:[%s2] sm:$0x1f] %vm105, %v89
  // Predicated region
  $region10: #{tpu_custom_call.1} parent=0 // pred_check
    _
  $region11: #{tpu_custom_call.1} parent=0 // pred_check_branch
    %108 = sbr.rel (0) target = $region13
  $region12: #{tpu_custom_call.1} parent=0 // pred_region
    _
  $region13: #{tpu_custom_call.1} parent=0 // pred_fallthru
    _
  // Predicated region
  $region14: #{tpu_custom_call.1} parent=0 // pred_check
    _
  $region15: #{tpu_custom_call.1} parent=0 // pred_check_branch
    %110 = sbr.rel (0) target = $region17
  $region16: #{tpu_custom_call.1} parent=0 // pred_region
    _
  $region17: #{tpu_custom_call.1} parent=0 // pred_fallthru
    _

</llo_original>
